<compile_context>
chip_gen: v7x
topology: tpu7x:2x2x1
jax: 0.10.0
libtpu: 0.0.40
codegen_flags: <defaults>
</compile_context>

<pallas_src>
import math

import jax
import jax.numpy as jnp
from jax.experimental import pallas as pl
from jax.experimental.pallas import tpu as pltpu


def _critic_kernel(s_ref, a_ref,
                   wA_s_ref, wA_a_ref, bA_ref,
                   wB_ref, bB_ref,
                   wC_ref, bC_ref,
                   out_ref):
    # Layer A: fused fc1/fc4, with the input concat folded into two dots.
    h = (jnp.dot(s_ref[...], wA_s_ref[...], preferred_element_type=jnp.float32)
         + jnp.dot(a_ref[...], wA_a_ref[...], preferred_element_type=jnp.float32)
         + bA_ref[...])
    h = jnp.maximum(h, 0.0)

    # Layer B: fused fc2/fc5 (block-diagonal weight keeps the heads independent).
    h = jnp.dot(h, wB_ref[...], preferred_element_type=jnp.float32) + bB_ref[...]
    h = jnp.maximum(h, 0.0)

    # Layer C: fused fc3/fc6 -> [TB, 2]  (col 0 = q1, col 1 = q2).
    q = jnp.dot(h, wC_ref[...], preferred_element_type=jnp.float32) + bC_ref[...]
    out_ref[...] = q.astype(out_ref.dtype)


def mlp_critic_forward(state, action, params, *, block_b=512):
    """Runs both Q-heads. state: [B, obs_dim], action: [B, act_dim].

    params = (w1, b1, w2, b2, w3, b3, w4, b4, w5, b5, w6, b6) with W stored as
    [in, out] and b as [1, out] (transposed vs. PyTorch's Linear.weight).
    Returns (q1, q2), each [B, 1] float32.
    """
    (w1, b1, w2, b2, w3, b3, w4, b4, w5, b5, w6, b6) = params

    B, obs_dim = state.shape
    act_dim = action.shape[1]
    H = w1.shape[1]
    H2 = 2 * H
    in_dim = obs_dim + act_dim
    dtype = jnp.float32

    # ---- Pack fused weights (tiny; constant-folds under jit with static params) ----
    wA = jnp.concatenate([w1, w4], axis=1)                     # [in_dim, 2H]
    wA_s = wA[:obs_dim]                                        # [obs_dim, 2H]
    wA_a = wA[obs_dim:]                                        # [act_dim, 2H]
    bA = jnp.concatenate([b1, b4], axis=1)                     # [1, 2H]

    wB = jnp.zeros((H2, H2), dtype)                            # block-diag(w2, w5)
    wB = wB.at[:H, :H].set(w2).at[H:, H:].set(w5)
    bB = jnp.concatenate([b2, b5], axis=1)                     # [1, 2H]

    wC = jnp.zeros((H2, 2), dtype)                             # [w3 | w6]
    wC = wC.at[:H, 0:1].set(w3).at[H:, 1:2].set(w6)
    bC = jnp.concatenate([b3, b6], axis=1)                     # [1, 2]

    # ---- Batch tiling ----
    if B <= block_b:
        TB = B                     # single tile: block dims == full array dims
        Bp = B
    else:
        assert block_b % 8 == 0, "batch tile must be a multiple of 8 sublanes"
        TB = block_b
        Bp = pl.cdiv(B, TB) * TB

    pad = Bp - B
    if pad:
        state = jnp.pad(state, ((0, pad), (0, 0)))
        action = jnp.pad(action, ((0, pad), (0, 0)))

    grid = (Bp // TB,)

    def tile_spec(shape):          # batch-tiled operand
        return pl.BlockSpec(shape, lambda i: (i, 0))

    def resident_spec(shape):      # weight/bias: same block every grid step -> stays in VMEM
        return pl.BlockSpec(shape, lambda i: (0, 0))

    in_specs = [
        tile_spec((TB, obs_dim)),
        tile_spec((TB, act_dim)),
        resident_spec(wA_s.shape),
        resident_spec(wA_a.shape),
        resident_spec(bA.shape),
        resident_spec(wB.shape),
        resident_spec(bB.shape),
        resident_spec(wC.shape),
        resident_spec(bC.shape),
    ]
    out_specs = tile_spec((TB, 2))

    param_elems = (in_dim * H2 + H2) + (H2 * H2 + H2) + (H2 * 2 + 2)
    cost = pl.CostEstimate(
        flops=2 * Bp * (in_dim * H2 + H2 * H2 + H2 * 2),
        transcendentals=0,
        bytes_accessed=4 * (Bp * (obs_dim + act_dim + 2) + param_elems),
    )

    out = pl.pallas_call(
        _critic_kernel,
        grid=grid,
        in_specs=in_specs,
        out_specs=out_specs,
        out_shape=jax.ShapeDtypeStruct((Bp, 2), jnp.float32),
        compiler_params=pltpu.CompilerParams(
            dimension_semantics=("parallel",),
        ),
        cost_estimate=cost,
    )(state, action, wA_s, wA_a, bA, wB, bB, wC, bC)

    q1 = out[:B, 0:1]
    q2 = out[:B, 1:2]
    return q1, q2


def init_linear(key, fan_in, fan_out):
    """Deterministic PyTorch-style nn.Linear init; returns (W[in,out], b[1,out])."""
    kw, kb = jax.random.split(key)
    bound = 1.0 / math.sqrt(fan_in)
    w = jax.random.uniform(kw, (fan_in, fan_out), jnp.float32, -bound, bound)
    b = jax.random.uniform(kb, (1, fan_out), jnp.float32, -bound, bound)
    return w, b


def _reference(state, action, params):
    (w1, b1, w2, b2, w3, b3, w4, b4, w5, b5, w6, b6) = params
    sa = jnp.concatenate([state, action], axis=1)
    r1 = jnp.maximum(sa @ w1 + b1, 0.0)
    r1 = jnp.maximum(r1 @ w2 + b2, 0.0)
    r1 = r1 @ w3 + b3
    r2 = jnp.maximum(sa @ w4 + b4, 0.0)
    r2 = jnp.maximum(r2 @ w5 + b5, 0.0)
    r2 = r2 @ w6 + b6
    return r1, r2


if __name__ == "__main__":
    # Small, module-consistent shapes.
    batch = 2
    obs_dim = 10
    action_dim = 4
    hidden = 32          # args.critic_hidden_dim
    in_dim = obs_dim + action_dim

    root = jax.random.PRNGKey(0)
    keys = jax.random.split(root, 8)

    # Parameters (fc1..fc6), deterministic.
    w1, b1 = init_linear(keys[0], in_dim, hidden)
    w2, b2 = init_linear(keys[1], hidden, hidden)
    w3, b3 = init_linear(keys[2], hidden, 1)
    w4, b4 = init_linear(keys[3], in_dim, hidden)
    w5, b5 = init_linear(keys[4], hidden, hidden)
    w6, b6 = init_linear(keys[5], hidden, 1)
    params = (w1, b1, w2, b2, w3, b3, w4, b4, w5, b5, w6, b6)

    # --- Small-batch run (single tile) ---
    state = jax.random.normal(keys[6], (batch, obs_dim), jnp.float32)
    action = jax.random.normal(keys[7], (batch, action_dim), jnp.float32)

    q1, q2 = mlp_critic_forward(state, action, params)
    jax.block_until_ready((q1, q2))

    r1, r2 = _reference(state, action, params)
    assert q1.shape == (batch, 1) and q2.shape == (batch, 1)
    assert jnp.allclose(q1, r1, atol=1e-5), "q1 mismatch (small batch)"
    assert jnp.allclose(q2, r2, atol=1e-5), "q2 mismatch (small batch)"

    # --- Larger batch to exercise the batch grid + padding path ---
    big_b = 600
    bk1, bk2 = jax.random.split(jax.random.PRNGKey(1))
    big_state = jax.random.normal(bk1, (big_b, obs_dim), jnp.float32)
    big_action = jax.random.normal(bk2, (big_b, action_dim), jnp.float32)

    bq1, bq2 = mlp_critic_forward(big_state, big_action, params, block_b=256)
    jax.block_until_ready((bq1, bq2))

    br1, br2 = _reference(big_state, big_action, params)
    assert bq1.shape == (big_b, 1) and bq2.shape == (big_b, 1)
    assert jnp.allclose(bq1, br1, atol=1e-5), "q1 mismatch (tiled batch)"
    assert jnp.allclose(bq2, br2, atol=1e-5), "q2 mismatch (tiled batch)"

    print("KERNEL_OK")
</pallas_src>

<mosaic_0001>
module attributes {stable_mosaic.version = 11 : i64} {
  func.func @_critic_kernel(%arg0: i32, %arg1: memref<2x10xf32, #tpu.memory_space<vmem>>, %arg2: memref<2x4xf32, #tpu.memory_space<vmem>>, %arg3: memref<10x64xf32, #tpu.memory_space<vmem>>, %arg4: memref<4x64xf32, #tpu.memory_space<vmem>>, %arg5: memref<1x64xf32, #tpu.memory_space<vmem>>, %arg6: memref<64x64xf32, #tpu.memory_space<vmem>>, %arg7: memref<1x64xf32, #tpu.memory_space<vmem>>, %arg8: memref<64x2xf32, #tpu.memory_space<vmem>>, %arg9: memref<1x2xf32, #tpu.memory_space<vmem>>, %arg10: memref<2x2xf32, #tpu.memory_space<vmem>>) attributes {dimension_semantics = [#tpu.dimension_semantics<parallel>], iteration_bounds = array<i64: 1>, scalar_prefetch = 0 : i64, scratch_operands = 0 : i64, tpu.core_type = #tpu.core_type<tc>, window_params = [{transform_indices = @transform_0, window_bounds = array<i64: 2, 10>}, {transform_indices = @transform_1, window_bounds = array<i64: 2, 4>}, {pipeline_mode = #tpu.pipeline_mode<synchronous>, transform_indices = @transform_2, window_bounds = array<i64: 10, 64>}, {pipeline_mode = #tpu.pipeline_mode<synchronous>, transform_indices = @transform_3, window_bounds = array<i64: 4, 64>}, {pipeline_mode = #tpu.pipeline_mode<synchronous>, transform_indices = @transform_4, window_bounds = array<i64: 1, 64>}, {pipeline_mode = #tpu.pipeline_mode<synchronous>, transform_indices = @transform_5, window_bounds = array<i64: 64, 64>}, {pipeline_mode = #tpu.pipeline_mode<synchronous>, transform_indices = @transform_6, window_bounds = array<i64: 1, 64>}, {pipeline_mode = #tpu.pipeline_mode<synchronous>, transform_indices = @transform_7, window_bounds = array<i64: 64, 2>}, {pipeline_mode = #tpu.pipeline_mode<synchronous>, transform_indices = @transform_8, window_bounds = array<i64: 1, 2>}, {transform_indices = @transform_9, window_bounds = array<i64: 2, 2>}]} {
    %c0 = arith.constant 0 : index
    %c0_0 = arith.constant 0 : index
    %0 = vector.load %arg1[%c0, %c0_0] : memref<2x10xf32, #tpu.memory_space<vmem>>, vector<2x10xf32>
    %c0_1 = arith.constant 0 : index
    %c0_2 = arith.constant 0 : index
    %1 = vector.load %arg3[%c0_1, %c0_2] : memref<10x64xf32, #tpu.memory_space<vmem>>, vector<10x64xf32>
    %cst = arith.constant dense<0.000000e+00> : vector<2x64xf32>
    %2 = tpu.matmul %0, %1, %cst {dimension_numbers = #tpu.dot_dimension_numbers<[1], [0], [0], [1], [0, 0, 1, 1], [], []>} : vector<2x10xf32>, vector<10x64xf32>, vector<2x64xf32> -> vector<2x64xf32>
    %c0_3 = arith.constant 0 : index
    %c0_4 = arith.constant 0 : index
    %3 = vector.load %arg2[%c0_3, %c0_4] : memref<2x4xf32, #tpu.memory_space<vmem>>, vector<2x4xf32>
    %c0_5 = arith.constant 0 : index
    %c0_6 = arith.constant 0 : index
    %4 = vector.load %arg4[%c0_5, %c0_6] : memref<4x64xf32, #tpu.memory_space<vmem>>, vector<4x64xf32>
    %cst_7 = arith.constant dense<0.000000e+00> : vector<2x64xf32>
    %5 = tpu.matmul %3, %4, %cst_7 {dimension_numbers = #tpu.dot_dimension_numbers<[1], [0], [0], [1], [0, 0, 1, 1], [], []>} : vector<2x4xf32>, vector<4x64xf32>, vector<2x64xf32> -> vector<2x64xf32>
    %6 = arith.addf %2, %5 : vector<2x64xf32>
    %c0_8 = arith.constant 0 : index
    %c0_9 = arith.constant 0 : index
    %7 = vector.load %arg5[%c0_8, %c0_9] : memref<1x64xf32, #tpu.memory_space<vmem>>, vector<1x64xf32>
    %8 = vector.broadcast %7 : vector<1x64xf32> to vector<2x64xf32>
    %9 = arith.addf %6, %8 : vector<2x64xf32>
    %cst_10 = arith.constant 0.000000e+00 : f32
    %10 = vector.broadcast %cst_10 : f32 to vector<2x64xf32>
    %11 = arith.maximumf %9, %10 : vector<2x64xf32>
    %c0_11 = arith.constant 0 : index
    %c0_12 = arith.constant 0 : index
    %12 = vector.load %arg6[%c0_11, %c0_12] : memref<64x64xf32, #tpu.memory_space<vmem>>, vector<64x64xf32>
    %cst_13 = arith.constant dense<0.000000e+00> : vector<2x64xf32>
    %13 = tpu.matmul %11, %12, %cst_13 {dimension_numbers = #tpu.dot_dimension_numbers<[1], [0], [0], [1], [0, 0, 1, 1], [], []>} : vector<2x64xf32>, vector<64x64xf32>, vector<2x64xf32> -> vector<2x64xf32>
    %c0_14 = arith.constant 0 : index
    %c0_15 = arith.constant 0 : index
    %14 = vector.load %arg7[%c0_14, %c0_15] : memref<1x64xf32, #tpu.memory_space<vmem>>, vector<1x64xf32>
    %15 = vector.broadcast %14 : vector<1x64xf32> to vector<2x64xf32>
    %16 = arith.addf %13, %15 : vector<2x64xf32>
    %cst_16 = arith.constant 0.000000e+00 : f32
    %17 = vector.broadcast %cst_16 : f32 to vector<2x64xf32>
    %18 = arith.maximumf %16, %17 : vector<2x64xf32>
    %c0_17 = arith.constant 0 : index
    %c0_18 = arith.constant 0 : index
    %19 = vector.load %arg8[%c0_17, %c0_18] : memref<64x2xf32, #tpu.memory_space<vmem>>, vector<64x2xf32>
    %cst_19 = arith.constant dense<0.000000e+00> : vector<2x2xf32>
    %20 = tpu.matmul %18, %19, %cst_19 {dimension_numbers = #tpu.dot_dimension_numbers<[1], [0], [0], [1], [0, 0, 1, 1], [], []>} : vector<2x64xf32>, vector<64x2xf32>, vector<2x2xf32> -> vector<2x2xf32>
    %c0_20 = arith.constant 0 : index
    %c0_21 = arith.constant 0 : index
    %21 = vector.load %arg9[%c0_20, %c0_21] : memref<1x2xf32, #tpu.memory_space<vmem>>, vector<1x2xf32>
    %22 = vector.broadcast %21 : vector<1x2xf32> to vector<2x2xf32>
    %23 = arith.addf %20, %22 : vector<2x2xf32>
    %c0_22 = arith.constant 0 : index
    %c0_23 = arith.constant 0 : index
    %24 = vector.load %arg10[%c0_22, %c0_23] : memref<2x2xf32, #tpu.memory_space<vmem>>, vector<2x2xf32>
    tpu.vector_store %arg10[%c0_22, %c0_23], %23 {strides = array<i32>} : memref<2x2xf32, #tpu.memory_space<vmem>>, vector<2x2xf32>,
    return
  }
  func.func @transform_0(%arg0: i32) -> (i32, i32) {
    %c0_i32 = arith.constant 0 : i32
    %c0_i32_0 = arith.constant 0 : i32
    return %arg0, %c0_i32 : i32, i32
  }
  func.func @transform_1(%arg0: i32) -> (i32, i32) {
    %c0_i32 = arith.constant 0 : i32
    %c0_i32_0 = arith.constant 0 : i32
    return %arg0, %c0_i32 : i32, i32
  }
  func.func @transform_2(%arg0: i32) -> (i32, i32) {
    %c0_i32 = arith.constant 0 : i32
    %c0_i32_0 = arith.constant 0 : i32
    %c0_i32_1 = arith.constant 0 : i32
    return %c0_i32, %c0_i32_0 : i32, i32
  }
  func.func @transform_3(%arg0: i32) -> (i32, i32) {
    %c0_i32 = arith.constant 0 : i32
    %c0_i32_0 = arith.constant 0 : i32
    %c0_i32_1 = arith.constant 0 : i32
    return %c0_i32, %c0_i32_0 : i32, i32
  }
  func.func @transform_4(%arg0: i32) -> (i32, i32) {
    %c0_i32 = arith.constant 0 : i32
    %c0_i32_0 = arith.constant 0 : i32
    %c0_i32_1 = arith.constant 0 : i32
    return %c0_i32, %c0_i32_0 : i32, i32
  }
  func.func @transform_5(%arg0: i32) -> (i32, i32) {
    %c0_i32 = arith.constant 0 : i32
    %c0_i32_0 = arith.constant 0 : i32
    %c0_i32_1 = arith.constant 0 : i32
    return %c0_i32, %c0_i32_0 : i32, i32
  }
  func.func @transform_6(%arg0: i32) -> (i32, i32) {
    %c0_i32 = arith.constant 0 : i32
    %c0_i32_0 = arith.constant 0 : i32
    %c0_i32_1 = arith.constant 0 : i32
    return %c0_i32, %c0_i32_0 : i32, i32
  }
  func.func @transform_7(%arg0: i32) -> (i32, i32) {
    %c0_i32 = arith.constant 0 : i32
    %c0_i32_0 = arith.constant 0 : i32
    %c0_i32_1 = arith.constant 0 : i32
    return %c0_i32, %c0_i32_0 : i32, i32
  }
  func.func @transform_8(%arg0: i32) -> (i32, i32) {
    %c0_i32 = arith.constant 0 : i32
    %c0_i32_0 = arith.constant 0 : i32
    %c0_i32_1 = arith.constant 0 : i32
    return %c0_i32, %c0_i32_0 : i32, i32
  }
  func.func @transform_9(%arg0: i32) -> (i32, i32) {
    %c0_i32 = arith.constant 0 : i32
    %c0_i32_0 = arith.constant 0 : i32
    return %arg0, %c0_i32 : i32, i32
  }
}

</mosaic_0001>

<llo_original>
// kernel: tpu_custom_call.1
$region0: #{tpu_custom_call.1}
  #allocation0 [shape = 'u32[]', space=smem, size = 0x4, offset = 0x4, fixed_abs, tag = 'smem constant byte address 0x4 - core index']
  #allocation1 [shape = 'u32[144,128]{1,0:T(1,128)}', space=vmem, size = 0x12000, scoped, tag = 'internal scratch']
  %s0 = inlined_call_operand.hbm [shape: f32[2,10], index: 0, kind: input, shape index: {}]
  %s1 = inlined_call_operand.hbm [shape: f32[2,4], index: 1, kind: input, shape index: {}]
  %s2 = inlined_call_operand.vmem [shape: f32[10,64], index: 2, kind: input, shape index: {}]
  %s3 = inlined_call_operand.vmem [shape: f32[4,64], index: 3, kind: input, shape index: {}]
  %s4 = inlined_call_operand.hbm [shape: f32[1,64], index: 4, kind: input, shape index: {}]
  %s5 = inlined_call_operand.vmem [shape: f32[64,64], index: 5, kind: input, shape index: {}]
  %s6 = inlined_call_operand.vmem [shape: f32[1,64], index: 6, kind: input, shape index: {}]
  %s7 = inlined_call_operand.vmem [shape: f32[64,2], index: 7, kind: input, shape index: {}]
  %s8 = inlined_call_operand.vmem [shape: f32[1,2], index: 8, kind: input, shape index: {}]
  %s9 = inlined_call_operand.hbm [shape: f32[2,2], index: 9, kind: output, shape index: {}]
  %s10 = sld [smem:[#allocation0]]
  $region58: #{tpu_custom_call.1} parent=0
    _
  %s12 = ssub.s32 1, %s10
  %s13 = scalar_select 0, %s12, %s10
  $region1: #{tpu_custom_call.1} parent=0
    #allocation2 [shape = 'u8[1024]{0}', space=vmem, size = 0x400, scoped, tag = 'input window, operand 0, single buffered']
    #allocation3 [shape = 's32[1]{0}', space=sflag, size = 0x4, scoped, tag = 'scoped memory for tpu_custom_call.1']
    #allocation4 [shape = 's32[1]{0}', space=sflag, size = 0x4, scoped, tag = 'scoped memory for tpu_custom_call.1']
    #allocation5 [shape = 'u8[1024]{0}', space=vmem, size = 0x400, scoped, tag = 'input window, operand 1, single buffered']
    #allocation6 [shape = 's32[1]{0}', space=sflag, size = 0x4, scoped, tag = 'scoped memory for tpu_custom_call.1']
    #allocation7 [shape = 'u8[512]{0}', space=vmem, size = 0x400, scoped, tag = 'input window, operand 4, single buffered']
    #allocation8 [shape = 'u8[1024]{0}', space=vmem, size = 0x400, scoped, tag = 'output window, operand 0, single buffered']
    %14 = vsyncpa [#allocation3], 0
    %15 = vsyncpa [#allocation6], 0
    %16 = vsyncpa [#allocation4], 0
    // Predicated region
    $region2: #{tpu_custom_call.1} parent=1 // pred_check
      _
    $region3: #{tpu_custom_call.1} parent=1 // pred_check_branch
      %18 = sbr.rel (0) target = $region5
    $region4: #{tpu_custom_call.1} parent=1 // pred_region
      %s20 = ssub.s32 32, 32
      %21 = vsyncadd [#allocation3], %s20
      %s23 = sshll.u32 [#allocation2], 4
      %s24 = int_to_ptr.vmem [resolvable:$true] %s23
      %26 = dma.hbm_to_vmem [thread:$0]  %s0, 32, %s24, [#allocation3]
    $region5: #{tpu_custom_call.1} parent=1 // pred_fallthru
      _
    // Predicated region
    $region6: #{tpu_custom_call.1} parent=1 // pred_check
      _
    $region7: #{tpu_custom_call.1} parent=1 // pred_check_branch
      %28 = sbr.rel (0) target = $region9
    $region8: #{tpu_custom_call.1} parent=1 // pred_region
      %s30 = ssub.s32 32, 32
      %31 = vsyncadd [#allocation6], %s30
      %s33 = sshll.u32 [#allocation5], 4
      %s34 = int_to_ptr.vmem [resolvable:$true] %s33
      %36 = dma.hbm_to_vmem [thread:$0]  %s1, 32, %s34, [#allocation6]
    $region9: #{tpu_custom_call.1} parent=1 // pred_fallthru
      _
    // Predicated region
    $region10: #{tpu_custom_call.1} parent=1 // pred_check
      _
    $region11: #{tpu_custom_call.1} parent=1 // pred_check_branch
      %38 = sbr.rel (0) target = $region13
    $region12: #{tpu_custom_call.1} parent=1 // pred_region
      _
    $region13: #{tpu_custom_call.1} parent=1 // pred_fallthru
      _
    // Predicated region
    $region14: #{tpu_custom_call.1} parent=1 // pred_check
      _
    $region15: #{tpu_custom_call.1} parent=1 // pred_check_branch
      %40 = sbr.rel (0) target = $region17
    $region16: #{tpu_custom_call.1} parent=1 // pred_region
      _
    $region17: #{tpu_custom_call.1} parent=1 // pred_fallthru
      _
    // Predicated region
    $region18: #{tpu_custom_call.1} parent=1 // pred_check
      _
    $region19: #{tpu_custom_call.1} parent=1 // pred_check_branch
      %42 = sbr.rel (0) target = $region21
    $region20: #{tpu_custom_call.1} parent=1 // pred_region
      %s44 = ssub.s32 16, 16
      %45 = vsyncadd [#allocation6], %s44
      %s47 = sshll.u32 [#allocation7], 4
      %s48 = int_to_ptr.vmem [resolvable:$true] %s47
      %50 = dma.hbm_to_vmem [thread:$0]  %s4, 16, %s48, [#allocation6]
    $region21: #{tpu_custom_call.1} parent=1 // pred_fallthru
      _
    // Predicated region
    $region22: #{tpu_custom_call.1} parent=1 // pred_check
      _
    $region23: #{tpu_custom_call.1} parent=1 // pred_check_branch
      %52 = sbr.rel (0) target = $region25
    $region24: #{tpu_custom_call.1} parent=1 // pred_region
      _
    $region25: #{tpu_custom_call.1} parent=1 // pred_fallthru
      _
    // Predicated region
    $region26: #{tpu_custom_call.1} parent=1 // pred_check
      _
    $region27: #{tpu_custom_call.1} parent=1 // pred_check_branch
      %54 = sbr.rel (0) target = $region29
    $region28: #{tpu_custom_call.1} parent=1 // pred_region
      _
    $region29: #{tpu_custom_call.1} parent=1 // pred_fallthru
      _
    // Predicated region
    $region30: #{tpu_custom_call.1} parent=1 // pred_check
      _
    $region31: #{tpu_custom_call.1} parent=1 // pred_check_branch
      %56 = sbr.rel (0) target = $region33
    $region32: #{tpu_custom_call.1} parent=1 // pred_region
      _
    $region33: #{tpu_custom_call.1} parent=1 // pred_fallthru
      _
    // Predicated region
    $region34: #{tpu_custom_call.1} parent=1 // pred_check
      _
    $region35: #{tpu_custom_call.1} parent=1 // pred_check_branch
      %58 = sbr.rel (0) target = $region37
    $region36: #{tpu_custom_call.1} parent=1 // pred_region
      _
    $region37: #{tpu_custom_call.1} parent=1 // pred_fallthru
      _
    // Predicated region
    $region38: #{tpu_custom_call.1} parent=1 // pred_check
      _
    $region39: #{tpu_custom_call.1} parent=1 // pred_check_branch
      %60 = sbr.rel (0) target = $region41
    $region40: #{tpu_custom_call.1} parent=1 // pred_region
      %61 = dma.done [#allocation3], 32
    $region41: #{tpu_custom_call.1} parent=1 // pred_fallthru
      _
    // Predicated region
    $region42: #{tpu_custom_call.1} parent=1 // pred_check
      _
    $region43: #{tpu_custom_call.1} parent=1 // pred_check_branch
      %63 = sbr.rel (0) target = $region45
    $region44: #{tpu_custom_call.1} parent=1 // pred_region
      %64 = dma.done [#allocation6], 32
    $region45: #{tpu_custom_call.1} parent=1 // pred_fallthru
      _
    // Predicated region
    $region46: #{tpu_custom_call.1} parent=1 // pred_check
      _
    $region47: #{tpu_custom_call.1} parent=1 // pred_check_branch
      %66 = sbr.rel (0) target = $region49
    $region48: #{tpu_custom_call.1} parent=1 // pred_region
      %67 = dma.done [#allocation6], 16
    $region49: #{tpu_custom_call.1} parent=1 // pred_fallthru
      _
    %v68 = vld [vmem:[#allocation2] sm:$0x3]
    %v69 = vld [vmem:[%s2] sm:$0xff]
    %v70 = vld [vmem:[%s2 + $0x8] sm:$0x3]
    %v71 = vld [vmem:[#allocation5] sm:$0x3]
    %v72 = vld [vmem:[%s3] sm:$0xf]
    %vm73 = vcmask 31744
    %v75 = vsel %vm73, %v71, 0
    %vm77 = vcmask 1043456
    %v79 = vsel %vm77, %v72, 0
    %81 = vmatprep.subr.mxu0 0.0
    %82 = vmatpush1.msra.mxu0 %v79
    %83 = vmatprep.subr.mxu0 0.0
    %84 = vmatpush1.msra.mxu0 0.0
    %85 = vmatprep.subr.mxu0 0.0
    %86 = vmatpush1.msra.mxu0 0.0
    %87 = vmatprep.subr.mxu0 0.0
    %88 = vmatpush1.msra.mxu0 0.0
    %89 = vmatprep.subr.mxu0 0.0
    %90 = vmatpush1.msra.mxu0 0.0
    %91 = vmatprep.subr.mxu0 0.0
    %92 = vmatpush1.msra.mxu0 0.0
    %93 = vmatprep.subr.mxu0 0.0
    %94 = vmatpush1.msra.mxu0 0.0
    %95 = vmatprep.subr.mxu0 0.0
    %96 = vmatpush1.msra.mxu0 0.0
    %97 = vmatprep.subr.mxu0 0.0
    %98 = vmatpush1.msra.mxu0 0.0
    %99 = vmatprep.subr.mxu0 0.0
    %100 = vmatpush1.msra.mxu0 0.0
    %101 = vmatprep.subr.mxu0 0.0
    %102 = vmatpush1.msra.mxu0 0.0
    %103 = vmatprep.subr.mxu0 0.0
    %104 = vmatpush1.msra.mxu0 0.0
    %105 = vmatprep.subr.mxu0 0.0
    %106 = vmatpush1.msra.mxu0 0.0
    %107 = vmatprep.subr.mxu0 0.0
    %108 = vmatpush1.msra.mxu0 0.0
    %109 = vmatprep.subr.mxu0 0.0
    %110 = vmatpush1.msra.mxu0 0.0
    %111 = vmatprep.subr.mxu0 0.0
    %112 = vmatpush1.msra.mxu0 0.0
    %113 = vmatprep.subr.mxu0 0.0
    %114 = vmatpush1.msra.mxu0 0.0
    %115 = vmatprep.subr.mxu0 0.0
    %116 = vmatpush1.msra.mxu0 0.0
    %117 = vmatprep.subr.mxu0 0.0
    %118 = vmatpush1.msra.mxu0 0.0
    %119 = vmatprep.subr.mxu0 0.0
    %120 = vmatpush1.msra.mxu0 0.0
    %121 = vmatprep.subr.mxu0 0.0
    %122 = vmatpush1.msra.mxu0 0.0
    %123 = vmatprep.subr.mxu0 0.0
    %124 = vmatpush1.msra.mxu0 0.0
    %125 = vmatprep.subr.mxu0 0.0
    %126 = vmatpush1.msra.mxu0 0.0
    %127 = vmatprep.subr.mxu0 0.0
    %128 = vmatpush1.msra.mxu0 0.0
    %129 = vmatprep.subr.mxu0 0.0
    %130 = vmatpush1.msra.mxu0 0.0
    %131 = vmatprep.subr.mxu0 0.0
    %132 = vmatpush1.msra.mxu0 0.0
    %133 = vmatprep.subr.mxu0 0.0
    %134 = vmatpush1.msra.mxu0 0.0
    %135 = vmatprep.subr.mxu0 0.0
    %136 = vmatpush1.msra.mxu0 0.0
    %137 = vmatprep.subr.mxu0 0.0
    %138 = vmatpush1.msra.mxu0 0.0
    %139 = vmatprep.subr.mxu0 0.0
    %140 = vmatpush1.msra.mxu0 0.0
    %141 = vmatprep.subr.mxu0 0.0
    %142 = vmatpush1.msra.mxu0 0.0
    %143 = vmatprep.subr.mxu0 0.0
    %144 = vmatpush1.msra.mxu0 0.0
    %145 = vmatprep.mubr.f32.mxu0 0.0
    %146 = vmatmul.mubr.f32.gmra.mrb[0].mxu0 %v75
    %v147 = vpop.f32.mrb[0].mxu0
    %v148 = vadd.f32 0.0, %v147
    %v149 = vpop.f32.mrb[0].mxu0
    %150 = vdwg.mxu0
    %vm151 = vcmask 80896
    %v153 = vsel %vm151, %v68, 0
    %vm155 = vcmask 1041408
    %v157 = vsel %vm155, %v70, 0
    %159 = vmatprep.subr.mxu0 0.0
    %160 = vmatpush1.msra.mxu0 %v69
    %161 = vmatprep.subr.mxu0 0.0
    %162 = vmatpush1.msra.mxu0 %v157
    %163 = vmatprep.subr.mxu0 0.0
    %164 = vmatpush1.msra.mxu0 0.0
    %165 = vmatprep.subr.mxu0 0.0
    %166 = vmatpush1.msra.mxu0 0.0
    %167 = vmatprep.subr.mxu0 0.0
    %168 = vmatpush1.msra.mxu0 0.0
    %169 = vmatprep.subr.mxu0 0.0
    %170 = vmatpush1.msra.mxu0 0.0
    %171 = vmatprep.subr.mxu0 0.0
    %172 = vmatpush1.msra.mxu0 0.0
    %173 = vmatprep.subr.mxu0 0.0
    %174 = vmatpush1.msra.mxu0 0.0
    %175 = vmatprep.subr.mxu0 0.0
    %176 = vmatpush1.msra.mxu0 0.0
    %177 = vmatprep.subr.mxu0 0.0
    %178 = vmatpush1.msra.mxu0 0.0
    %179 = vmatprep.subr.mxu0 0.0
    %180 = vmatpush1.msra.mxu0 0.0
    %181 = vmatprep.subr.mxu0 0.0
    %182 = vmatpush1.msra.mxu0 0.0
    %183 = vmatprep.subr.mxu0 0.0
    %184 = vmatpush1.msra.mxu0 0.0
    %185 = vmatprep.subr.mxu0 0.0
    %186 = vmatpush1.msra.mxu0 0.0
    %187 = vmatprep.subr.mxu0 0.0
    %188 = vmatpush1.msra.mxu0 0.0
    %189 = vmatprep.subr.mxu0 0.0
    %190 = vmatpush1.msra.mxu0 0.0
    %191 = vmatprep.subr.mxu0 0.0
    %192 = vmatpush1.msra.mxu0 0.0
    %193 = vmatprep.subr.mxu0 0.0
    %194 = vmatpush1.msra.mxu0 0.0
    %195 = vmatprep.subr.mxu0 0.0
    %196 = vmatpush1.msra.mxu0 0.0
    %197 = vmatprep.subr.mxu0 0.0
    %198 = vmatpush1.msra.mxu0 0.0
    %199 = vmatprep.subr.mxu0 0.0
    %200 = vmatpush1.msra.mxu0 0.0
    %201 = vmatprep.subr.mxu0 0.0
    %202 = vmatpush1.msra.mxu0 0.0
    %203 = vmatprep.subr.mxu0 0.0
    %204 = vmatpush1.msra.mxu0 0.0
    %205 = vmatprep.subr.mxu0 0.0
    %206 = vmatpush1.msra.mxu0 0.0
    %207 = vmatprep.subr.mxu0 0.0
    %208 = vmatpush1.msra.mxu0 0.0
    %209 = vmatprep.subr.mxu0 0.0
    %210 = vmatpush1.msra.mxu0 0.0
    %211 = vmatprep.subr.mxu0 0.0
    %212 = vmatpush1.msra.mxu0 0.0
    %213 = vmatprep.subr.mxu0 0.0
    %214 = vmatpush1.msra.mxu0 0.0
    %215 = vmatprep.subr.mxu0 0.0
    %216 = vmatpush1.msra.mxu0 0.0
    %217 = vmatprep.subr.mxu0 0.0
    %218 = vmatpush1.msra.mxu0 0.0
    %219 = vmatprep.subr.mxu0 0.0
    %220 = vmatpush1.msra.mxu0 0.0
    %221 = vmatprep.subr.mxu0 0.0
    %222 = vmatpush1.msra.mxu0 0.0
    %223 = vmatprep.mubr.f32.mxu0 0.0
    %224 = vmatmul.mubr.f32.gmra.mrb[0].mxu0 %v153
    %v225 = vpop.f32.mrb[0].mxu0
    %v226 = vadd.f32 %v148, %v225
    %v227 = vpop.f32.mrb[0].mxu0
    %228 = vdwg.mxu0
    %v229 = vld [vmem:[#allocation7] sm:$0x1]
    %v231 = vlaneseq
    %v232 = vshrl.u32 %v231, 7
    %v233 = vsub.s32 0, %v232
    %v234 = vrot.slane %v229, %v233
    %v236 = vadd.f32 %v226, %v234
    %v237 = vmax.f32 %v236, 0.0
    %v238 = vld [vmem:[%s5] sm:$0xff]
    %v239 = vld [vmem:[%s5 + $0x8] sm:$0xff]
    %v240 = vld [vmem:[%s5 + $0x10] sm:$0xff]
    %v241 = vld [vmem:[%s5 + $0x18] sm:$0xff]
    %v242 = vld [vmem:[%s5 + $0x20] sm:$0xff]
    %v243 = vld [vmem:[%s5 + $0x28] sm:$0xff]
    %v244 = vld [vmem:[%s5 + $0x30] sm:$0xff]
    %v245 = vld [vmem:[%s5 + $0x38] sm:$0xff]
    %v246 = vld [vmem:[%s6] sm:$0x1]
    %v248 = vlaneseq
    %v249 = vshrl.u32 %v248, 7
    %v250 = vsub.s32 0, %v249
    %v251 = vrot.slane %v246, %v250
    %vm253 = vcmask 523264
    %v255 = vsel %vm253, %v237, 0
    %257 = vmatprep.subr.mxu0 0.0
    %258 = vmatpush1.msra.mxu0 %v238
    %259 = vmatprep.subr.mxu0 0.0
    %260 = vmatpush1.msra.mxu0 %v239
    %261 = vmatprep.subr.mxu0 0.0
    %262 = vmatpush1.msra.mxu0 %v240
    %263 = vmatprep.subr.mxu0 0.0
    %264 = vmatpush1.msra.mxu0 %v241
    %265 = vmatprep.subr.mxu0 0.0
    %266 = vmatpush1.msra.mxu0 %v242
    %267 = vmatprep.subr.mxu0 0.0
    %268 = vmatpush1.msra.mxu0 %v243
    %269 = vmatprep.subr.mxu0 0.0
    %270 = vmatpush1.msra.mxu0 %v244
    %271 = vmatprep.subr.mxu0 0.0
    %272 = vmatpush1.msra.mxu0 %v245
    %273 = vmatprep.subr.mxu0 0.0
    %274 = vmatpush1.msra.mxu0 0.0
    %275 = vmatprep.subr.mxu0 0.0
    %276 = vmatpush1.msra.mxu0 0.0
    %277 = vmatprep.subr.mxu0 0.0
    %278 = vmatpush1.msra.mxu0 0.0
    %279 = vmatprep.subr.mxu0 0.0
    %280 = vmatpush1.msra.mxu0 0.0
    %281 = vmatprep.subr.mxu0 0.0
    %282 = vmatpush1.msra.mxu0 0.0
    %283 = vmatprep.subr.mxu0 0.0
    %284 = vmatpush1.msra.mxu0 0.0
    %285 = vmatprep.subr.mxu0 0.0
    %286 = vmatpush1.msra.mxu0 0.0
    %287 = vmatprep.subr.mxu0 0.0
    %288 = vmatpush1.msra.mxu0 0.0
    %289 = vmatprep.subr.mxu0 0.0
    %290 = vmatpush1.msra.mxu0 0.0
    %291 = vmatprep.subr.mxu0 0.0
    %292 = vmatpush1.msra.mxu0 0.0
    %293 = vmatprep.subr.mxu0 0.0
    %294 = vmatpush1.msra.mxu0 0.0
    %295 = vmatprep.subr.mxu0 0.0
    %296 = vmatpush1.msra.mxu0 0.0
    %297 = vmatprep.subr.mxu0 0.0
    %298 = vmatpush1.msra.mxu0 0.0
    %299 = vmatprep.subr.mxu0 0.0
    %300 = vmatpush1.msra.mxu0 0.0
    %301 = vmatprep.subr.mxu0 0.0
    %302 = vmatpush1.msra.mxu0 0.0
    %303 = vmatprep.subr.mxu0 0.0
    %304 = vmatpush1.msra.mxu0 0.0
    %305 = vmatprep.subr.mxu0 0.0
    %306 = vmatpush1.msra.mxu0 0.0
    %307 = vmatprep.subr.mxu0 0.0
    %308 = vmatpush1.msra.mxu0 0.0
    %309 = vmatprep.subr.mxu0 0.0
    %310 = vmatpush1.msra.mxu0 0.0
    %311 = vmatprep.subr.mxu0 0.0
    %312 = vmatpush1.msra.mxu0 0.0
    %313 = vmatprep.subr.mxu0 0.0
    %314 = vmatpush1.msra.mxu0 0.0
    %315 = vmatprep.subr.mxu0 0.0
    %316 = vmatpush1.msra.mxu0 0.0
    %317 = vmatprep.subr.mxu0 0.0
    %318 = vmatpush1.msra.mxu0 0.0
    %319 = vmatprep.subr.mxu0 0.0
    %320 = vmatpush1.msra.mxu0 0.0
    %321 = vmatprep.mubr.f32.mxu0 0.0
    %322 = vmatmul.mubr.f32.gmra.mrb[0].mxu0 %v255
    %v323 = vpop.f32.mrb[0].mxu0
    %v324 = vadd.f32 %v251, %v323
    %v325 = vpop.f32.mrb[0].mxu0
    %326 = vdwg.mxu0
    %v327 = vmax.f32 %v324, 0.0
    %v328 = vld [vmem:[%s7] sm:$0xff]
    %v329 = vld [vmem:[%s7 + $0x8] sm:$0xff]
    %v330 = vld [vmem:[%s7 + $0x10] sm:$0xff]
    %v331 = vld [vmem:[%s7 + $0x18] sm:$0xff]
    %v332 = vld [vmem:[%s7 + $0x20] sm:$0xff]
    %v333 = vld [vmem:[%s7 + $0x28] sm:$0xff]
    %v334 = vld [vmem:[%s7 + $0x30] sm:$0xff]
    %v335 = vld [vmem:[%s7 + $0x38] sm:$0xff]
    %v336 = vld [vmem:[%s8] sm:$0x1]
    %v338 = vlaneseq
    %v339 = vshrl.u32 %v338, 7
    %v340 = vsub.s32 0, %v339
    %v341 = vrot.slane %v336, %v340
    %v344 = vsel %vm253, %v327, 0
    %346 = vmatprep.subr.mxu0 0.0
    %347 = vmatpush1.msra.mxu0 %v328
    %348 = vmatprep.subr.mxu0 0.0
    %349 = vmatpush1.msra.mxu0 %v329
    %350 = vmatprep.subr.mxu0 0.0
    %351 = vmatpush1.msra.mxu0 %v330
    %352 = vmatprep.subr.mxu0 0.0
    %353 = vmatpush1.msra.mxu0 %v331
    %354 = vmatprep.subr.mxu0 0.0
    %355 = vmatpush1.msra.mxu0 %v332
    %356 = vmatprep.subr.mxu0 0.0
    %357 = vmatpush1.msra.mxu0 %v333
    %358 = vmatprep.subr.mxu0 0.0
    %359 = vmatpush1.msra.mxu0 %v334
    %360 = vmatprep.subr.mxu0 0.0
    %361 = vmatpush1.msra.mxu0 %v335
    %362 = vmatprep.subr.mxu0 0.0
    %363 = vmatpush1.msra.mxu0 0.0
    %364 = vmatprep.subr.mxu0 0.0
    %365 = vmatpush1.msra.mxu0 0.0
    %366 = vmatprep.subr.mxu0 0.0
    %367 = vmatpush1.msra.mxu0 0.0
    %368 = vmatprep.subr.mxu0 0.0
    %369 = vmatpush1.msra.mxu0 0.0
    %370 = vmatprep.subr.mxu0 0.0
    %371 = vmatpush1.msra.mxu0 0.0
    %372 = vmatprep.subr.mxu0 0.0
    %373 = vmatpush1.msra.mxu0 0.0
    %374 = vmatprep.subr.mxu0 0.0
    %375 = vmatpush1.msra.mxu0 0.0
    %376 = vmatprep.subr.mxu0 0.0
    %377 = vmatpush1.msra.mxu0 0.0
    %378 = vmatprep.subr.mxu0 0.0
    %379 = vmatpush1.msra.mxu0 0.0
    %380 = vmatprep.subr.mxu0 0.0
    %381 = vmatpush1.msra.mxu0 0.0
    %382 = vmatprep.subr.mxu0 0.0
    %383 = vmatpush1.msra.mxu0 0.0
    %384 = vmatprep.subr.mxu0 0.0
    %385 = vmatpush1.msra.mxu0 0.0
    %386 = vmatprep.subr.mxu0 0.0
    %387 = vmatpush1.msra.mxu0 0.0
    %388 = vmatprep.subr.mxu0 0.0
    %389 = vmatpush1.msra.mxu0 0.0
    %390 = vmatprep.subr.mxu0 0.0
    %391 = vmatpush1.msra.mxu0 0.0
    %392 = vmatprep.subr.mxu0 0.0
    %393 = vmatpush1.msra.mxu0 0.0
    %394 = vmatprep.subr.mxu0 0.0
    %395 = vmatpush1.msra.mxu0 0.0
    %396 = vmatprep.subr.mxu0 0.0
    %397 = vmatpush1.msra.mxu0 0.0
    %398 = vmatprep.subr.mxu0 0.0
    %399 = vmatpush1.msra.mxu0 0.0
    %400 = vmatprep.subr.mxu0 0.0
    %401 = vmatpush1.msra.mxu0 0.0
    %402 = vmatprep.subr.mxu0 0.0
    %403 = vmatpush1.msra.mxu0 0.0
    %404 = vmatprep.subr.mxu0 0.0
    %405 = vmatpush1.msra.mxu0 0.0
    %406 = vmatprep.subr.mxu0 0.0
    %407 = vmatpush1.msra.mxu0 0.0
    %408 = vmatprep.subr.mxu0 0.0
    %409 = vmatpush1.msra.mxu0 0.0
    %410 = vmatprep.mubr.f32.mxu0 0.0
    %411 = vmatmul.mubr.f32.gmra.mrb[0].mxu0 %v344
    %v412 = vpop.f32.mrb[0].mxu0
    %v413 = vadd.f32 %v341, %v412
    %v414 = vpop.f32.mrb[0].mxu0
    %415 = vdwg.mxu0
    %vm416 = vcmask 9216
    %417 = vst.msk [vmem:[#allocation8] sm:$0x3] %vm416, %v413
    // Predicated region
    $region50: #{tpu_custom_call.1} parent=1 // pred_check
      _
    $region51: #{tpu_custom_call.1} parent=1 // pred_check_branch
      %419 = sbr.rel (0) target = $region53
    $region52: #{tpu_custom_call.1} parent=1 // pred_region
      %s421 = ssub.s32 32, 32
      %422 = vsyncadd [#allocation4], %s421
      %s424 = sshll.u32 [#allocation8], 4
      %s425 = int_to_ptr.vmem [resolvable:$true] %s424
      %427 = dma.vmem_to_hbm [thread:$0]  %s425, 32, %s9, [#allocation4]
    $region53: #{tpu_custom_call.1} parent=1 // pred_fallthru
      _
    // Predicated region
    $region54: #{tpu_custom_call.1} parent=1 // pred_check
      _
    $region55: #{tpu_custom_call.1} parent=1 // pred_check_branch
      %429 = sbr.rel (0) target = $region57
    $region56: #{tpu_custom_call.1} parent=1 // pred_region
      %430 = dma.done [#allocation4], 32
    $region57: #{tpu_custom_call.1} parent=1 // pred_fallthru
      _
    %431 = vsyncpa [#allocation3], 1
    %432 = vsyncpa [#allocation6], 1
    %433 = vsyncpa [#allocation4], 1

</llo_original>
